<compile_context>
chip_gen: v7x
topology: tpu7x:2x2x1
jax: 0.10.0
libtpu: 0.0.40
codegen_flags: <defaults>
</compile_context>

<pallas_src>
import math
from functools import partial

import jax
import jax.numpy as jnp
from jax import lax
from jax.experimental import pallas as pl
from jax.experimental.pallas import tpu as pltpu


def _round_up(x, m):
    return (x + m - 1) // m * m


def _cdiv(a, b):
    return (a + b - 1) // b


def _leaky_relu(x, slope=0.01):
    # F.leaky_relu default negative_slope = 0.01
    return jnp.where(x > 0, x, slope * x)


# ---------------------------------------------------------------------------
# Kernel
# ---------------------------------------------------------------------------
def actor_critic_kernel(x_ref, wx_ref, wh_ref, ws_ref, b_ref, out_ref, *,
                        action_dim, dp, out_w):
    # x_ref  : (TB, S)       bf16  flattened state at true width (no lane padding)
    # wx_ref : (S, 2*DP)     bf16  [actor.fc1 | critic.fc1 (state rows)]
    # wh_ref : (DP, 2*DP)    bf16  [mean | std-logits | pad  ||  a_wm @ c_w1[S:,:] | pad]
    # ws_ref : (3, DP, DP)   bf16  [actor.fc2, critic.fc2, value-head (col 2A)]
    # b_ref  : (8, DP)       f32   [a_b1, c_b1 + a_bm@c_w1[S:,:], a_b2, b_heads, c_b2, b_val, 0, 0]
    # out_ref: (TB, OUT_W)   bf16  cols [0:A)=mean, [A:2A)=std, [2A]=value, rest 0
    A = action_dim
    x = x_ref[...]
    b = b_ref[...]

    # --- one fused MXU pass for everything that consumes the state ---
    xz = jnp.dot(x, wx_ref[...], preferred_element_type=jnp.float32)     # (TB, 2*DP)
    h1 = _leaky_relu(xz[:, :dp] + b[0:1, :])                              # actor fc1
    c1_state = xz[:, dp:] + b[1:2, :]                # critic fc1 state-part (+c_b1+b')

    # --- actor fc2 ---
    h2 = _leaky_relu(
        jnp.dot(h1.astype(jnp.bfloat16), ws_ref[0], preferred_element_type=jnp.float32)
        + b[2:3, :]
    )

    # --- fused heads + critic-fc1(mean): one (DP, 2*DP) matmul ---
    hf = jnp.dot(h2.astype(jnp.bfloat16), wh_ref[...],
                 preferred_element_type=jnp.float32)                      # (TB, 2*DP)
    head = hf[:, :dp] + b[3:4, :]          # cols [0:A)=mean, [A:2A)=std-logits, rest 0
    c1 = _leaky_relu(c1_state + hf[:, dp:])          # exact fold of mean @ c_w1[S:,:]

    # --- critic fc2 / value head ---
    c2 = _leaky_relu(
        jnp.dot(c1.astype(jnp.bfloat16), ws_ref[1], preferred_element_type=jnp.float32)
        + b[4:5, :]
    )
    val = (
        jnp.dot(c2.astype(jnp.bfloat16), ws_ref[2], preferred_element_type=jnp.float32)
        + b[5:6, :]
    )                                                  # only column 2A is non-zero

    # --- lane-dense output slab: mean | exp(std-logits) | value | zeros ---
    head_o = head[:, :out_w]
    col = lax.broadcasted_iota(jnp.int32, head_o.shape, 1)
    is_std = (col >= A) & (col < 2 * A)
    std = jnp.exp(jnp.where(is_std, head_o, 0.0))      # guard: no inf from huge means
    out = jnp.where(is_std, std, head_o) + val[:, :out_w]
    out_ref[...] = out.astype(out_ref.dtype)


# ---------------------------------------------------------------------------
# Parameter init (matches torch xavier_uniform_ / constant_(bias, 0)) + packing
# ---------------------------------------------------------------------------
def xavier_uniform(key, fan_in, fan_out, dtype=jnp.float32):
    bound = math.sqrt(6.0 / (fan_in + fan_out))
    # stored as (in, out) so the kernel computes x @ W
    return jax.random.uniform(key, (fan_in, fan_out), dtype, minval=-bound, maxval=bound)


def init_params(key, state_dim, hidden_dim, action_dim):
    ks = jax.random.split(key, 7)
    p = {}
    # actor
    p["a_w1"] = xavier_uniform(ks[0], state_dim, hidden_dim)
    p["a_b1"] = jnp.zeros((hidden_dim,), jnp.float32)
    p["a_w2"] = xavier_uniform(ks[1], hidden_dim, hidden_dim)
    p["a_b2"] = jnp.zeros((hidden_dim,), jnp.float32)
    p["a_wm"] = xavier_uniform(ks[2], hidden_dim, action_dim)
    p["a_bm"] = jnp.zeros((action_dim,), jnp.float32)
    p["a_ws"] = xavier_uniform(ks[3], hidden_dim, action_dim)
    p["a_bs"] = jnp.zeros((action_dim,), jnp.float32)
    # critic (fc1 takes [state, action] concatenated)
    p["c_w1"] = xavier_uniform(ks[4], state_dim + action_dim, hidden_dim)
    p["c_b1"] = jnp.zeros((hidden_dim,), jnp.float32)
    p["c_w2"] = xavier_uniform(ks[5], hidden_dim, hidden_dim)
    p["c_b2"] = jnp.zeros((hidden_dim,), jnp.float32)
    p["c_w3"] = xavier_uniform(ks[6], hidden_dim, 1)
    p["c_b3"] = jnp.zeros((1,), jnp.float32)
    return p


def pack_params(p, state_dim, hidden_dim, action_dim):
    """Zero-pad the hidden/head dims to 128-lane multiples and pack into 4 slabs."""
    S, H, A = state_dim, hidden_dim, action_dim
    DP = max(_round_up(H, 128), _round_up(2 * A + 1, 128))
    OUT_W = _round_up(2 * A + 1, 128)

    def pad2(a, r, c):
        return jnp.zeros((r, c), jnp.float32).at[: a.shape[0], : a.shape[1]].set(a)

    def pad1(v):
        return jnp.zeros((DP,), jnp.float32).at[: v.shape[0]].set(v)

    # fused state matmul weight: [actor.fc1 | critic.fc1 state-rows]  -> (S, 2*DP)
    wx = jnp.concatenate(
        [pad2(p["a_w1"], S, DP), pad2(p["c_w1"][:S, :], S, DP)], axis=1
    ).astype(jnp.bfloat16)

    # exact fold of the critic-fc1(action) matmul into the heads matmul:
    #   mean @ c_w1[S:, :] == h2 @ (a_wm @ c_w1[S:, :]) + a_bm @ c_w1[S:, :]
    # NOTE: the critic consumes this bf16-folded contribution instead of a
    # bf16-rounded mean; both deviate from the f32 torch reference at ~bf16 eps.
    w_c1a = p["c_w1"][S:, :]                    # (A, H)
    w_prime = p["a_wm"] @ w_c1a                 # (H, H)
    b_prime = p["a_bm"] @ w_c1a                 # (H,)
    wh = (
        jnp.zeros((DP, 2 * DP), jnp.float32)
        .at[:H, :A].set(p["a_wm"])
        .at[:H, A:2 * A].set(p["a_ws"])
        .at[:H, DP:DP + H].set(w_prime)
    ).astype(jnp.bfloat16)                                              # (DP, 2*DP)

    # value head padded to DP lanes; only column 2A is non-zero
    w_val = jnp.zeros((DP, DP), jnp.float32).at[:H, 2 * A].set(p["c_w3"][:, 0])
    ws = jnp.stack(
        [pad2(p["a_w2"], DP, DP), pad2(p["c_w2"], DP, DP), w_val]
    ).astype(jnp.bfloat16)                                              # (3, DP, DP)

    b_head = (
        jnp.zeros((DP,), jnp.float32).at[:A].set(p["a_bm"]).at[A:2 * A].set(p["a_bs"])
    )
    b_val = jnp.zeros((DP,), jnp.float32).at[2 * A].set(p["c_b3"][0])
    bias = jnp.stack(
        [pad1(p["a_b1"]), pad1(p["c_b1"] + b_prime), pad1(p["a_b2"]), b_head,
         pad1(p["c_b2"]), b_val,
         jnp.zeros((DP,), jnp.float32), jnp.zeros((DP,), jnp.float32)]
    )                                                                   # (8, DP) f32

    return {"wx": wx, "wh": wh, "ws": ws, "bias": bias,
            "S": S, "DP": DP, "OUT_W": OUT_W}


# ---------------------------------------------------------------------------
# Tiling choice: big tiles (amortize per-step overhead), adaptive (bound padding
# waste to < 1 tile), >= 2 grid steps when possible (v7x megacore), <= 1024 rows
# (fits v5e's 16 MiB default scoped VMEM without raising vmem_limit_bytes).
# ---------------------------------------------------------------------------
def _choose_tiles(B, tb_max=1024):
    b8 = _round_up(max(B, 1), 8)
    min_tiles = 2 if b8 >= 16 else 1          # v7x: shard across both TensorCores
    num_tiles = max(min_tiles, _cdiv(b8, tb_max))
    tile_b = _round_up(_cdiv(b8, num_tiles), 8)
    b_pad = num_tiles * tile_b
    return tile_b, b_pad, num_tiles


# ---------------------------------------------------------------------------
# Forward wrapper
# ---------------------------------------------------------------------------
def actor_critic_forward(state, packed, action_dim):
    # state.view(state.size(0), -1) is glue, done here
    B = state.shape[0]
    x = state.reshape(B, -1)
    S, DP, OUT_W = packed["S"], packed["DP"], packed["OUT_W"]
    A = action_dim
    assert x.shape[1] == S

    tile_b, b_pad, num_tiles = _choose_tiles(B)

    # single fused cast (+ row pad to the tile multiple); no 128-lane padding of x
    x = x.astype(jnp.bfloat16)
    if b_pad != B:
        x = jnp.zeros((b_pad, S), jnp.bfloat16).at[:B].set(x)

    kernel = partial(actor_critic_kernel, action_dim=A, dp=DP, out_w=OUT_W)

    out = pl.pallas_call(
        kernel,
        out_shape=jax.ShapeDtypeStruct((b_pad, OUT_W), jnp.bfloat16),
        grid_spec=pltpu.PrefetchScalarGridSpec(
            num_scalar_prefetch=0,
            grid=(num_tiles,),
            in_specs=[
                pl.BlockSpec((tile_b, S), lambda i: (i, 0)),     # x: streamed, true width
                pl.BlockSpec((S, 2 * DP), lambda i: (0, 0)),     # fused fc1 weight: resident
                pl.BlockSpec((DP, 2 * DP), lambda i: (0, 0)),    # fused heads weight: resident
                pl.BlockSpec((3, DP, DP), lambda i: (0, 0, 0)),  # weight stack: resident
                pl.BlockSpec((8, DP), lambda i: (0, 0)),         # bias slab: resident
            ],
            out_specs=pl.BlockSpec((tile_b, OUT_W), lambda i: (i, 0)),
        ),
        compiler_params=pltpu.CompilerParams(dimension_semantics=("parallel",)),
    )(x, packed["wx"], packed["wh"], packed["ws"], packed["bias"])

    mean = out[:B, :A].astype(jnp.float32)
    std = out[:B, A:2 * A].astype(jnp.float32)
    value = out[:B, 2 * A:2 * A + 1].astype(jnp.float32)
    # TODO(synk): torch.distributions.Normal(mean, std) is host-side glue; we return its parameters.
    return (mean, std), value


if __name__ == "__main__":
    key = jax.random.PRNGKey(0)
    k_state, k_params = jax.random.split(key)

    B, C, L = 2, 4, 8           # raw state (B, 4, 8) -> flattened input_dim = 32
    state_dim = C * L
    hidden_dim = 32
    action_dim = 4

    state = jax.random.normal(k_state, (B, C, L), dtype=jnp.float32)
    params = init_params(k_params, state_dim, hidden_dim, action_dim)
    packed = pack_params(params, state_dim, hidden_dim, action_dim)

    (mean, std), value = actor_critic_forward(state, packed, action_dim)
    jax.block_until_ready((mean, std, value))

    # pure-JAX f32 reference (kernel matmuls/outputs are bf16 -> loose tolerance)
    def lrelu(v):
        return jnp.where(v > 0, v, 0.01 * v)

    x = state.reshape(B, -1)
    h1 = lrelu(x @ params["a_w1"] + params["a_b1"])
    h2 = lrelu(h1 @ params["a_w2"] + params["a_b2"])
    ref_mean = h2 @ params["a_wm"] + params["a_bm"]
    ref_std = jnp.exp(h2 @ params["a_ws"] + params["a_bs"])
    xc = jnp.concatenate([x, ref_mean], axis=1)
    c1 = lrelu(xc @ params["c_w1"] + params["c_b1"])
    c2 = lrelu(c1 @ params["c_w2"] + params["c_b2"])
    ref_value = c2 @ params["c_w3"] + params["c_b3"]

    assert mean.shape == (B, action_dim)
    assert std.shape == (B, action_dim)
    assert value.shape == (B, 1)
    assert bool(jnp.all(std > 0))
    assert bool(jnp.allclose(mean, ref_mean, rtol=5e-2, atol=5e-2))
    assert bool(jnp.allclose(std, ref_std, rtol=5e-2, atol=5e-2))
    assert bool(jnp.allclose(value, ref_value, rtol=5e-2, atol=5e-2))
    print("KERNEL_OK")
</pallas_src>

<mosaic_0001>
module attributes {stable_mosaic.version = 11 : i64} {
  func.func @actor_critic_kernel(%arg0: i32, %arg1: memref<8x32xbf16, #tpu.memory_space<vmem>>, %arg2: memref<32x256xbf16, #tpu.memory_space<vmem>>, %arg3: memref<128x256xbf16, #tpu.memory_space<vmem>>, %arg4: memref<3x128x128xbf16, #tpu.memory_space<vmem>>, %arg5: memref<8x128xf32, #tpu.memory_space<vmem>>, %arg6: memref<8x128xbf16, #tpu.memory_space<vmem>>) attributes {dimension_semantics = [#tpu.dimension_semantics<parallel>], iteration_bounds = array<i64: 1>, scalar_prefetch = 0 : i64, scratch_operands = 0 : i64, tpu.core_type = #tpu.core_type<tc>, window_params = [{transform_indices = @transform_0, window_bounds = array<i64: 8, 32>}, {pipeline_mode = #tpu.pipeline_mode<synchronous>, transform_indices = @transform_1, window_bounds = array<i64: 32, 256>}, {pipeline_mode = #tpu.pipeline_mode<synchronous>, transform_indices = @transform_2, window_bounds = array<i64: 128, 256>}, {pipeline_mode = #tpu.pipeline_mode<synchronous>, transform_indices = @transform_3, window_bounds = array<i64: 3, 128, 128>}, {pipeline_mode = #tpu.pipeline_mode<synchronous>, transform_indices = @transform_4, window_bounds = array<i64: 8, 128>}, {transform_indices = @transform_5, window_bounds = array<i64: 8, 128>}]} {
    %c0 = arith.constant 0 : index
    %c0_0 = arith.constant 0 : index
    %0 = vector.load %arg1[%c0, %c0_0] : memref<8x32xbf16, #tpu.memory_space<vmem>>, vector<8x32xbf16>
    %c0_1 = arith.constant 0 : index
    %c0_2 = arith.constant 0 : index
    %1 = vector.load %arg5[%c0_1, %c0_2] : memref<8x128xf32, #tpu.memory_space<vmem>>, vector<8x128xf32>
    %c0_3 = arith.constant 0 : index
    %c0_4 = arith.constant 0 : index
    %2 = vector.load %arg2[%c0_3, %c0_4] : memref<32x256xbf16, #tpu.memory_space<vmem>>, vector<32x256xbf16>
    %cst = arith.constant dense<0.000000e+00> : vector<8x256xf32>
    %3 = tpu.matmul %0, %2, %cst {dimension_numbers = #tpu.dot_dimension_numbers<[1], [0], [0], [1], [0, 0, 1, 1], [], []>} : vector<8x32xbf16>, vector<32x256xbf16>, vector<8x256xf32> -> vector<8x256xf32>
    %4 = vector.extract_strided_slice %3 {offsets = [0, 0], sizes = [8, 128], strides = [1, 1]} : vector<8x256xf32> to vector<8x128xf32>
    %5 = vector.extract_strided_slice %1 {offsets = [0, 0], sizes = [1, 128], strides = [1, 1]} : vector<8x128xf32> to vector<1x128xf32>
    %6 = vector.broadcast %5 : vector<1x128xf32> to vector<8x128xf32>
    %7 = arith.addf %4, %6 : vector<8x128xf32>
    %cst_5 = arith.constant 0.000000e+00 : f32
    %8 = vector.broadcast %cst_5 : f32 to vector<8x128xf32>
    %9 = arith.cmpf ogt, %7, %8 : vector<8x128xf32>
    %cst_6 = arith.constant 0.00999999977 : f32
    %10 = vector.broadcast %cst_6 : f32 to vector<8x128xf32>
    %11 = arith.mulf %10, %7 : vector<8x128xf32>
    %12 = arith.select %9, %7, %11 : vector<8x128xi1>, vector<8x128xf32>
    %13 = vector.extract_strided_slice %3 {offsets = [0, 128], sizes = [8, 128], strides = [1, 1]} : vector<8x256xf32> to vector<8x128xf32>
    %14 = vector.extract_strided_slice %1 {offsets = [1, 0], sizes = [1, 128], strides = [1, 1]} : vector<8x128xf32> to vector<1x128xf32>
    %15 = vector.broadcast %14 : vector<1x128xf32> to vector<8x128xf32>
    %16 = arith.addf %13, %15 : vector<8x128xf32>
    %17 = arith.truncf %12 : vector<8x128xf32> to vector<8x128xbf16>
    %c0_7 = arith.constant 0 : index
    %c0_8 = arith.constant 0 : index
    %c0_9 = arith.constant 0 : index
    %18 = vector.load %arg4[%c0_7, %c0_8, %c0_9] : memref<3x128x128xbf16, #tpu.memory_space<vmem>>, vector<1x128x128xbf16>
    %19 = vector.shape_cast %18 : vector<1x128x128xbf16> to vector<128x128xbf16>
    %cst_10 = arith.constant dense<0.000000e+00> : vector<8x128xf32>
    %20 = tpu.matmul %17, %19, %cst_10 {dimension_numbers = #tpu.dot_dimension_numbers<[1], [0], [0], [1], [0, 0, 1, 1], [], []>} : vector<8x128xbf16>, vector<128x128xbf16>, vector<8x128xf32> -> vector<8x128xf32>
    %21 = vector.extract_strided_slice %1 {offsets = [2, 0], sizes = [1, 128], strides = [1, 1]} : vector<8x128xf32> to vector<1x128xf32>
    %22 = vector.broadcast %21 : vector<1x128xf32> to vector<8x128xf32>
    %23 = arith.addf %20, %22 : vector<8x128xf32>
    %cst_11 = arith.constant 0.000000e+00 : f32
    %24 = vector.broadcast %cst_11 : f32 to vector<8x128xf32>
    %25 = arith.cmpf ogt, %23, %24 : vector<8x128xf32>
    %cst_12 = arith.constant 0.00999999977 : f32
    %26 = vector.broadcast %cst_12 : f32 to vector<8x128xf32>
    %27 = arith.mulf %26, %23 : vector<8x128xf32>
    %28 = arith.select %25, %23, %27 : vector<8x128xi1>, vector<8x128xf32>
    %29 = arith.truncf %28 : vector<8x128xf32> to vector<8x128xbf16>
    %c0_13 = arith.constant 0 : index
    %c0_14 = arith.constant 0 : index
    %30 = vector.load %arg3[%c0_13, %c0_14] : memref<128x256xbf16, #tpu.memory_space<vmem>>, vector<128x256xbf16>
    %cst_15 = arith.constant dense<0.000000e+00> : vector<8x256xf32>
    %31 = tpu.matmul %29, %30, %cst_15 {dimension_numbers = #tpu.dot_dimension_numbers<[1], [0], [0], [1], [0, 0, 1, 1], [], []>} : vector<8x128xbf16>, vector<128x256xbf16>, vector<8x256xf32> -> vector<8x256xf32>
    %32 = vector.extract_strided_slice %31 {offsets = [0, 0], sizes = [8, 128], strides = [1, 1]} : vector<8x256xf32> to vector<8x128xf32>
    %33 = vector.extract_strided_slice %1 {offsets = [3, 0], sizes = [1, 128], strides = [1, 1]} : vector<8x128xf32> to vector<1x128xf32>
    %34 = vector.broadcast %33 : vector<1x128xf32> to vector<8x128xf32>
    %35 = arith.addf %32, %34 : vector<8x128xf32>
    %36 = vector.extract_strided_slice %31 {offsets = [0, 128], sizes = [8, 128], strides = [1, 1]} : vector<8x256xf32> to vector<8x128xf32>
    %37 = arith.addf %16, %36 : vector<8x128xf32>
    %cst_16 = arith.constant 0.000000e+00 : f32
    %38 = vector.broadcast %cst_16 : f32 to vector<8x128xf32>
    %39 = arith.cmpf ogt, %37, %38 : vector<8x128xf32>
    %cst_17 = arith.constant 0.00999999977 : f32
    %40 = vector.broadcast %cst_17 : f32 to vector<8x128xf32>
    %41 = arith.mulf %40, %37 : vector<8x128xf32>
    %42 = arith.select %39, %37, %41 : vector<8x128xi1>, vector<8x128xf32>
    %43 = arith.truncf %42 : vector<8x128xf32> to vector<8x128xbf16>
    %c1 = arith.constant 1 : index
    %c0_18 = arith.constant 0 : index
    %c0_19 = arith.constant 0 : index
    %44 = vector.load %arg4[%c1, %c0_18, %c0_19] : memref<3x128x128xbf16, #tpu.memory_space<vmem>>, vector<1x128x128xbf16>
    %45 = vector.shape_cast %44 : vector<1x128x128xbf16> to vector<128x128xbf16>
    %cst_20 = arith.constant dense<0.000000e+00> : vector<8x128xf32>
    %46 = tpu.matmul %43, %45, %cst_20 {dimension_numbers = #tpu.dot_dimension_numbers<[1], [0], [0], [1], [0, 0, 1, 1], [], []>} : vector<8x128xbf16>, vector<128x128xbf16>, vector<8x128xf32> -> vector<8x128xf32>
    %47 = vector.extract_strided_slice %1 {offsets = [4, 0], sizes = [1, 128], strides = [1, 1]} : vector<8x128xf32> to vector<1x128xf32>
    %48 = vector.broadcast %47 : vector<1x128xf32> to vector<8x128xf32>
    %49 = arith.addf %46, %48 : vector<8x128xf32>
    %cst_21 = arith.constant 0.000000e+00 : f32
    %50 = vector.broadcast %cst_21 : f32 to vector<8x128xf32>
    %51 = arith.cmpf ogt, %49, %50 : vector<8x128xf32>
    %cst_22 = arith.constant 0.00999999977 : f32
    %52 = vector.broadcast %cst_22 : f32 to vector<8x128xf32>
    %53 = arith.mulf %52, %49 : vector<8x128xf32>
    %54 = arith.select %51, %49, %53 : vector<8x128xi1>, vector<8x128xf32>
    %55 = arith.truncf %54 : vector<8x128xf32> to vector<8x128xbf16>
    %c2 = arith.constant 2 : index
    %c0_23 = arith.constant 0 : index
    %c0_24 = arith.constant 0 : index
    %56 = vector.load %arg4[%c2, %c0_23, %c0_24] : memref<3x128x128xbf16, #tpu.memory_space<vmem>>, vector<1x128x128xbf16>
    %57 = vector.shape_cast %56 : vector<1x128x128xbf16> to vector<128x128xbf16>
    %cst_25 = arith.constant dense<0.000000e+00> : vector<8x128xf32>
    %58 = tpu.matmul %55, %57, %cst_25 {dimension_numbers = #tpu.dot_dimension_numbers<[1], [0], [0], [1], [0, 0, 1, 1], [], []>} : vector<8x128xbf16>, vector<128x128xbf16>, vector<8x128xf32> -> vector<8x128xf32>
    %59 = vector.extract_strided_slice %1 {offsets = [5, 0], sizes = [1, 128], strides = [1, 1]} : vector<8x128xf32> to vector<1x128xf32>
    %60 = vector.broadcast %59 : vector<1x128xf32> to vector<8x128xf32>
    %61 = arith.addf %58, %60 : vector<8x128xf32>
    %62 = tpu.iota {dimensions = array<i32: 1>} : vector<8x128xi32>
    %c4_i32 = arith.constant 4 : i32
    %63 = vector.broadcast %c4_i32 : i32 to vector<8x128xi32>
    %64 = arith.cmpi sge, %62, %63 : vector<8x128xi32>
    %c8_i32 = arith.constant 8 : i32
    %65 = vector.broadcast %c8_i32 : i32 to vector<8x128xi32>
    %66 = arith.cmpi slt, %62, %65 : vector<8x128xi32>
    %67 = arith.andi %64, %66 : vector<8x128xi1>
    %cst_26 = arith.constant 0.000000e+00 : f32
    %68 = vector.broadcast %cst_26 : f32 to vector<8x128xf32>
    %69 = arith.select %67, %35, %68 : vector<8x128xi1>, vector<8x128xf32>
    %70 = math.exp %69 : vector<8x128xf32>
    %71 = arith.select %67, %70, %35 : vector<8x128xi1>, vector<8x128xf32>
    %72 = arith.addf %71, %61 : vector<8x128xf32>
    %73 = arith.truncf %72 : vector<8x128xf32> to vector<8x128xbf16>
    %c0_27 = arith.constant 0 : index
    %c0_28 = arith.constant 0 : index
    %74 = vector.load %arg6[%c0_27, %c0_28] : memref<8x128xbf16, #tpu.memory_space<vmem>>, vector<8x128xbf16>
    tpu.vector_store %arg6[%c0_27, %c0_28], %73 {strides = array<i32>} : memref<8x128xbf16, #tpu.memory_space<vmem>>, vector<8x128xbf16>,
    return
  }
  func.func @transform_0(%arg0: i32) -> (i32, i32) {
    %c0_i32 = arith.constant 0 : i32
    %c0_i32_0 = arith.constant 0 : i32
    return %arg0, %c0_i32 : i32, i32
  }
  func.func @transform_1(%arg0: i32) -> (i32, i32) {
    %c0_i32 = arith.constant 0 : i32
    %c0_i32_0 = arith.constant 0 : i32
    %c0_i32_1 = arith.constant 0 : i32
    return %c0_i32, %c0_i32_0 : i32, i32
  }
  func.func @transform_2(%arg0: i32) -> (i32, i32) {
    %c0_i32 = arith.constant 0 : i32
    %c0_i32_0 = arith.constant 0 : i32
    %c0_i32_1 = arith.constant 0 : i32
    return %c0_i32, %c0_i32_0 : i32, i32
  }
  func.func @transform_3(%arg0: i32) -> (i32, i32, i32) {
    %c0_i32 = arith.constant 0 : i32
    %c0_i32_0 = arith.constant 0 : i32
    %c0_i32_1 = arith.constant 0 : i32
    %c0_i32_2 = arith.constant 0 : i32
    return %c0_i32, %c0_i32_0, %c0_i32_1 : i32, i32, i32
  }
  func.func @transform_4(%arg0: i32) -> (i32, i32) {
    %c0_i32 = arith.constant 0 : i32
    %c0_i32_0 = arith.constant 0 : i32
    %c0_i32_1 = arith.constant 0 : i32
    return %c0_i32, %c0_i32_0 : i32, i32
  }
  func.func @transform_5(%arg0: i32) -> (i32, i32) {
    %c0_i32 = arith.constant 0 : i32
    %c0_i32_0 = arith.constant 0 : i32
    return %arg0, %c0_i32 : i32, i32
  }
}

</mosaic_0001>

<llo_original>
// kernel: tpu_custom_call.1
$region0: #{tpu_custom_call.1}
  #allocation0 [shape = 'u32[]', space=smem, size = 0x4, offset = 0x4, fixed_abs, tag = 'smem constant byte address 0x4 - core index']
  #allocation1 [shape = 'u32[144,128]{1,0:T(1,128)}', space=vmem, size = 0x12000, scoped, tag = 'internal scratch']
  %s0 = inlined_call_operand.hbm [shape: bf16[8,32], index: 0, kind: input, shape index: {}]
  %s1 = inlined_call_operand.hbm [shape: bf16[32,256], index: 1, kind: input, shape index: {}]
  %s2 = inlined_call_operand.hbm [shape: bf16[128,256], index: 2, kind: input, shape index: {}]
  %s3 = inlined_call_operand.hbm [shape: bf16[3,128,128], index: 3, kind: input, shape index: {}]
  %s4 = inlined_call_operand.vmem [shape: f32[8,128], index: 4, kind: input, shape index: {}]
  %s5 = inlined_call_operand.hbm [shape: bf16[8,128], index: 5, kind: output, shape index: {}]
  %s6 = sld [smem:[#allocation0]]
  $region46: #{tpu_custom_call.1} parent=0
    _
  %s8 = ssub.s32 1, %s6
  %s9 = scalar_select 0, %s8, %s6
  $region1: #{tpu_custom_call.1} parent=0
    #allocation2 [shape = 'u8[2048]{0}', space=vmem, size = 0x800, scoped, tag = 'input window, operand 0, single buffered']
    #allocation3 [shape = 's32[1]{0}', space=sflag, size = 0x4, scoped, tag = 'scoped memory for tpu_custom_call.1']
    #allocation4 [shape = 's32[1]{0}', space=sflag, size = 0x4, scoped, tag = 'scoped memory for tpu_custom_call.1']
    #allocation5 [shape = 'u8[16384]{0}', space=vmem, size = 0x4000, scoped, tag = 'input window, operand 1, single buffered']
    #allocation6 [shape = 's32[1]{0}', space=sflag, size = 0x4, scoped, tag = 'scoped memory for tpu_custom_call.1']
    #allocation7 [shape = 'u8[65536]{0}', space=vmem, size = 0x10000, scoped, tag = 'input window, operand 2, single buffered']
    #allocation8 [shape = 'u8[98304]{0}', space=vmem, size = 0x18000, scoped, tag = 'input window, operand 3, single buffered']
    #allocation9 [shape = 's32[1]{0}', space=sflag, size = 0x4, scoped, tag = 'scoped memory for tpu_custom_call.1']
    #allocation10 [shape = 'u8[2048]{0}', space=vmem, size = 0x800, scoped, tag = 'output window, operand 0, single buffered']
    %10 = vsyncpa [#allocation3], 0
    %11 = vsyncpa [#allocation6], 0
    %12 = vsyncpa [#allocation9], 0
    %13 = vsyncpa [#allocation4], 0
    // Predicated region
    $region2: #{tpu_custom_call.1} parent=1 // pred_check
      _
    $region3: #{tpu_custom_call.1} parent=1 // pred_check_branch
      %15 = sbr.rel (0) target = $region5
    $region4: #{tpu_custom_call.1} parent=1 // pred_region
      %s17 = ssub.s32 64, 64
      %18 = vsyncadd [#allocation3], %s17
      %s20 = sshll.u32 [#allocation2], 4
      %s21 = int_to_ptr.vmem [resolvable:$true] %s20
      %23 = dma.hbm_to_vmem [thread:$0]  %s0, 64, %s21, [#allocation3]
    $region5: #{tpu_custom_call.1} parent=1 // pred_fallthru
      _
    // Predicated region
    $region6: #{tpu_custom_call.1} parent=1 // pred_check
      _
    $region7: #{tpu_custom_call.1} parent=1 // pred_check_branch
      %25 = sbr.rel (0) target = $region9
    $region8: #{tpu_custom_call.1} parent=1 // pred_region
      %s27 = ssub.s32 512, 512
      %28 = vsyncadd [#allocation6], %s27
      %s29 = sshll.u32 [#allocation5], 4
      %s30 = int_to_ptr.vmem [resolvable:$true] %s29
      %35 = dma.hbm_to_vmem [thread:$0]  %s1, 512, %s30, [#allocation6], 128, 128, 8
    $region9: #{tpu_custom_call.1} parent=1 // pred_fallthru
      _
    // Predicated region
    $region10: #{tpu_custom_call.1} parent=1 // pred_check
      _
    $region11: #{tpu_custom_call.1} parent=1 // pred_check_branch
      %37 = sbr.rel (0) target = $region13
    $region12: #{tpu_custom_call.1} parent=1 // pred_region
      %s39 = ssub.s32 2048, 2048
      %40 = vsyncadd [#allocation6], %s39
      %s41 = sshll.u32 [#allocation7], 4
      %s42 = int_to_ptr.vmem [resolvable:$true] %s41
      %47 = dma.hbm_to_vmem [thread:$0]  %s2, 2048, %s42, [#allocation6], 128, 128, 8
    $region13: #{tpu_custom_call.1} parent=1 // pred_fallthru
      _
    // Predicated region
    $region14: #{tpu_custom_call.1} parent=1 // pred_check
      _
    $region15: #{tpu_custom_call.1} parent=1 // pred_check_branch
      %49 = sbr.rel (0) target = $region17
    $region16: #{tpu_custom_call.1} parent=1 // pred_region
      %s51 = ssub.s32 3072, 3072
      %52 = vsyncadd [#allocation9], %s51
      %s53 = sshll.u32 [#allocation8], 4
      %s54 = int_to_ptr.vmem [resolvable:$true] %s53
      %59 = dma.hbm_to_vmem [thread:$0]  %s3, 3072, %s54, [#allocation9], 64, 64, 4
    $region17: #{tpu_custom_call.1} parent=1 // pred_fallthru
      _
    // Predicated region
    $region18: #{tpu_custom_call.1} parent=1 // pred_check
      _
    $region19: #{tpu_custom_call.1} parent=1 // pred_check_branch
      %61 = sbr.rel (0) target = $region21
    $region20: #{tpu_custom_call.1} parent=1 // pred_region
      _
    $region21: #{tpu_custom_call.1} parent=1 // pred_fallthru
      _
    // Predicated region
    $region22: #{tpu_custom_call.1} parent=1 // pred_check
      _
    $region23: #{tpu_custom_call.1} parent=1 // pred_check_branch
      %63 = sbr.rel (0) target = $region25
    $region24: #{tpu_custom_call.1} parent=1 // pred_region
      %64 = dma.done [#allocation3], 64
    $region25: #{tpu_custom_call.1} parent=1 // pred_fallthru
      _
    // Predicated region
    $region26: #{tpu_custom_call.1} parent=1 // pred_check
      _
    $region27: #{tpu_custom_call.1} parent=1 // pred_check_branch
      %66 = sbr.rel (0) target = $region29
    $region28: #{tpu_custom_call.1} parent=1 // pred_region
      %67 = dma.done [#allocation6], 512
    $region29: #{tpu_custom_call.1} parent=1 // pred_fallthru
      _
    // Predicated region
    $region30: #{tpu_custom_call.1} parent=1 // pred_check
      _
    $region31: #{tpu_custom_call.1} parent=1 // pred_check_branch
      %69 = sbr.rel (0) target = $region33
    $region32: #{tpu_custom_call.1} parent=1 // pred_region
      %70 = dma.done [#allocation6], 2048
    $region33: #{tpu_custom_call.1} parent=1 // pred_fallthru
      _
    // Predicated region
    $region34: #{tpu_custom_call.1} parent=1 // pred_check
      _
    $region35: #{tpu_custom_call.1} parent=1 // pred_check_branch
      %72 = sbr.rel (0) target = $region37
    $region36: #{tpu_custom_call.1} parent=1 // pred_region
      %73 = dma.done [#allocation9], 3072
    $region37: #{tpu_custom_call.1} parent=1 // pred_fallthru
      _
    %v75 = vld [vmem:[#allocation2] sm:$0xf]
    %v76 = vld [vmem:[%s4] sm:$0xff]
    %v77 = vld [vmem:[#allocation5] sm:$0xff]
    %v78 = vld [vmem:[#allocation5 + $0x8] sm:$0xff]
    %v79 = vld [vmem:[#allocation5 + $0x10] sm:$0xff]
    %v80 = vld [vmem:[#allocation5 + $0x18] sm:$0xff]
    %v85 = vunpack.c.l.b16 %v77
    %v86 = vunpack.c.h.b16 %v77
    %v87 = vunpack.c.l.b16 %v78
    %v88 = vunpack.c.h.b16 %v78
    %v89 = vunpack.c.l.b16 %v79
    %v90 = vunpack.c.h.b16 %v79
    %v91 = vunpack.c.l.b16 %v80
    %v92 = vunpack.c.h.b16 %v80
    %v93 = vpack.c.b16 %v87, %v85
    %v94 = vpack.c.b16 %v88, %v86
    %v95 = vpack.c.b16 %v91, %v89
    %v96 = vpack.c.b16 %v92, %v90
    %vm101 = vcmask 261120
    %v103 = vsel %vm101, %v75, 0
    %105 = vmatprep.subr.bf16.mxu0 %v94
    %106 = vmatpush1.bf16.msra.mxu0 %v93
    %107 = vmatprep.subr.bf16.mxu0 %v96
    %108 = vmatpush1.bf16.msra.mxu0 %v95
    %109 = vmatprep.subr.bf16.mxu0 0
    %110 = vmatpush1.bf16.msra.mxu0 0
    %111 = vmatprep.subr.bf16.mxu0 0
    %112 = vmatpush1.bf16.msra.mxu0 0
    %113 = vmatprep.subr.bf16.mxu0 0
    %114 = vmatpush1.bf16.msra.mxu0 0
    %115 = vmatprep.subr.bf16.mxu0 0
    %116 = vmatpush1.bf16.msra.mxu0 0
    %117 = vmatprep.subr.bf16.mxu0 0
    %118 = vmatpush1.bf16.msra.mxu0 0
    %119 = vmatprep.subr.bf16.mxu0 0
    %120 = vmatpush1.bf16.msra.mxu0 0
    %121 = vmatprep.subr.bf16.mxu0 0
    %122 = vmatpush1.bf16.msra.mxu0 0
    %123 = vmatprep.subr.bf16.mxu0 0
    %124 = vmatpush1.bf16.msra.mxu0 0
    %125 = vmatprep.subr.bf16.mxu0 0
    %126 = vmatpush1.bf16.msra.mxu0 0
    %127 = vmatprep.subr.bf16.mxu0 0
    %128 = vmatpush1.bf16.msra.mxu0 0
    %129 = vmatprep.subr.bf16.mxu0 0
    %130 = vmatpush1.bf16.msra.mxu0 0
    %131 = vmatprep.subr.bf16.mxu0 0
    %132 = vmatpush1.bf16.msra.mxu0 0
    %133 = vmatprep.subr.bf16.mxu0 0
    %134 = vmatpush1.bf16.msra.mxu0 0
    %135 = vmatprep.subr.bf16.mxu0 0
    %136 = vmatpush1.bf16.msra.mxu0 0
    %137 = vmatprep.mubr.bf16.mxu0 0
    %138 = vmatmul.mubr.bf16.gmra.mrb[0].mxu0 %v103
    %v139 = vpop.f32.mrb[0].mxu0
    %v140 = vadd.f32 0.0, %v139
    %v141 = vpop.f32.mrb[0].mxu0
    %v142 = vadd.f32 0.0, %v141
    %v143 = vpop.f32.mrb[0].mxu0
    %v144 = vpop.f32.mrb[0].mxu0
    %145 = vdwg.mxu0
    %v146 = vlaneseq
    %v147 = vshrl.u32 %v146, 7
    %v148 = vsub.s32 0, %v147
    %v149 = vrot.slane %v76, %v148
    %v150 = vadd.f32 %v140, %v149
    %vm151 = vcmp.gt.f32.partialorder %v150, 0.0
    %v152 = vmul.f32 %v150, 0.01
    %v153 = vsel %vm151, %v150, %v152
    %v154 = vlaneseq
    %v155 = vshrl.u32 %v154, 7
    %v156 = vsub.s32 1, %v155
    %v157 = vrot.slane %v76, %v156
    %v158 = vadd.f32 %v142, %v157
    %v159 = vpack.c.bf16 %v153, %v153
    %v160 = vld [vmem:[#allocation8] sm:$0xf]
    %v161 = vld [vmem:[#allocation8 + $0x4] sm:$0xf]
    %v162 = vld [vmem:[#allocation8 + $0x8] sm:$0xf]
    %v163 = vld [vmem:[#allocation8 + $0xc] sm:$0xf]
    %v164 = vld [vmem:[#allocation8 + $0x10] sm:$0xf]
    %v165 = vld [vmem:[#allocation8 + $0x14] sm:$0xf]
    %v166 = vld [vmem:[#allocation8 + $0x18] sm:$0xf]
    %v167 = vld [vmem:[#allocation8 + $0x1c] sm:$0xf]
    %v168 = vld [vmem:[#allocation8 + $0x20] sm:$0xf]
    %v169 = vld [vmem:[#allocation8 + $0x24] sm:$0xf]
    %v170 = vld [vmem:[#allocation8 + $0x28] sm:$0xf]
    %v171 = vld [vmem:[#allocation8 + $0x2c] sm:$0xf]
    %v172 = vld [vmem:[#allocation8 + $0x30] sm:$0xf]
    %v173 = vld [vmem:[#allocation8 + $0x34] sm:$0xf]
    %v174 = vld [vmem:[#allocation8 + $0x38] sm:$0xf]
    %v175 = vld [vmem:[#allocation8 + $0x3c] sm:$0xf]
    %v176 = vlaneseq
    %v177 = vshrl.u32 %v176, 7
    %v178 = vsub.s32 2, %v177
    %v179 = vrot.slane %v76, %v178
    %v196 = vunpack.c.l.b16 %v160
    %v197 = vunpack.c.l.b16 %v161
    %v198 = vunpack.c.l.b16 %v162
    %v199 = vunpack.c.l.b16 %v163
    %v200 = vunpack.c.l.b16 %v164
    %v201 = vunpack.c.l.b16 %v165
    %v202 = vunpack.c.l.b16 %v166
    %v203 = vunpack.c.l.b16 %v167
    %v204 = vunpack.c.l.b16 %v168
    %v205 = vunpack.c.l.b16 %v169
    %v206 = vunpack.c.l.b16 %v170
    %v207 = vunpack.c.l.b16 %v171
    %v208 = vunpack.c.l.b16 %v172
    %v209 = vunpack.c.l.b16 %v173
    %v210 = vunpack.c.l.b16 %v174
    %v211 = vunpack.c.l.b16 %v175
    %v212 = vpack.c.b16 %v197, %v196
    %v213 = vpack.c.b16 %v199, %v198
    %v214 = vpack.c.b16 %v201, %v200
    %v215 = vpack.c.b16 %v203, %v202
    %v216 = vpack.c.b16 %v205, %v204
    %v217 = vpack.c.b16 %v207, %v206
    %v218 = vpack.c.b16 %v209, %v208
    %v219 = vpack.c.b16 %v211, %v210
    %228 = vmatprep.subr.bf16.mxu0 0
    %229 = vmatpush1.bf16.msra.mxu0 %v212
    %230 = vmatprep.subr.bf16.mxu0 0
    %231 = vmatpush1.bf16.msra.mxu0 %v213
    %232 = vmatprep.subr.bf16.mxu0 0
    %233 = vmatpush1.bf16.msra.mxu0 %v214
    %234 = vmatprep.subr.bf16.mxu0 0
    %235 = vmatpush1.bf16.msra.mxu0 %v215
    %236 = vmatprep.subr.bf16.mxu0 0
    %237 = vmatpush1.bf16.msra.mxu0 %v216
    %238 = vmatprep.subr.bf16.mxu0 0
    %239 = vmatpush1.bf16.msra.mxu0 %v217
    %240 = vmatprep.subr.bf16.mxu0 0
    %241 = vmatpush1.bf16.msra.mxu0 %v218
    %242 = vmatprep.subr.bf16.mxu0 0
    %243 = vmatpush1.bf16.msra.mxu0 %v219
    %244 = vmatprep.subr.bf16.mxu0 0
    %245 = vmatpush1.bf16.msra.mxu0 0
    %246 = vmatprep.subr.bf16.mxu0 0
    %247 = vmatpush1.bf16.msra.mxu0 0
    %248 = vmatprep.subr.bf16.mxu0 0
    %249 = vmatpush1.bf16.msra.mxu0 0
    %250 = vmatprep.subr.bf16.mxu0 0
    %251 = vmatpush1.bf16.msra.mxu0 0
    %252 = vmatprep.subr.bf16.mxu0 0
    %253 = vmatpush1.bf16.msra.mxu0 0
    %254 = vmatprep.subr.bf16.mxu0 0
    %255 = vmatpush1.bf16.msra.mxu0 0
    %256 = vmatprep.subr.bf16.mxu0 0
    %257 = vmatpush1.bf16.msra.mxu0 0
    %258 = vmatprep.subr.bf16.mxu0 0
    %259 = vmatpush1.bf16.msra.mxu0 0
    %260 = vmatprep.mubr.bf16.mxu0 0
    %261 = vmatmul.mubr.bf16.gmra.mrb[0].mxu0 %v159
    %v262 = vpop.f32.mrb[0].mxu0
    %v263 = vadd.f32 %v179, %v262
    %v264 = vpop.f32.mrb[0].mxu0
    %v265 = vpop.f32.mrb[0].mxu0
    %v266 = vpop.f32.mrb[0].mxu0
    %267 = vdwg.mxu0
    %vm268 = vcmp.gt.f32.partialorder %v263, 0.0
    %v269 = vmul.f32 %v263, 0.01
    %v270 = vsel %vm268, %v263, %v269
    %v271 = vpack.c.bf16 %v270, %v270
    %v272 = vld [vmem:[#allocation7] sm:$0xff]
    %v273 = vld [vmem:[#allocation7 + $0x8] sm:$0xff]
    %v274 = vld [vmem:[#allocation7 + $0x10] sm:$0xff]
    %v275 = vld [vmem:[#allocation7 + $0x18] sm:$0xff]
    %v276 = vld [vmem:[#allocation7 + $0x20] sm:$0xff]
    %v277 = vld [vmem:[#allocation7 + $0x28] sm:$0xff]
    %v278 = vld [vmem:[#allocation7 + $0x30] sm:$0xff]
    %v279 = vld [vmem:[#allocation7 + $0x38] sm:$0xff]
    %v280 = vld [vmem:[#allocation7 + $0x40] sm:$0xff]
    %v281 = vld [vmem:[#allocation7 + $0x48] sm:$0xff]
    %v282 = vld [vmem:[#allocation7 + $0x50] sm:$0xff]
    %v283 = vld [vmem:[#allocation7 + $0x58] sm:$0xff]
    %v284 = vld [vmem:[#allocation7 + $0x60] sm:$0xff]
    %v285 = vld [vmem:[#allocation7 + $0x68] sm:$0xff]
    %v286 = vld [vmem:[#allocation7 + $0x70] sm:$0xff]
    %v287 = vld [vmem:[#allocation7 + $0x78] sm:$0xff]
    %v304 = vunpack.c.l.b16 %v272
    %v305 = vunpack.c.h.b16 %v272
    %v306 = vunpack.c.l.b16 %v273
    %v307 = vunpack.c.h.b16 %v273
    %v308 = vunpack.c.l.b16 %v274
    %v309 = vunpack.c.h.b16 %v274
    %v310 = vunpack.c.l.b16 %v275
    %v311 = vunpack.c.h.b16 %v275
    %v312 = vunpack.c.l.b16 %v276
    %v313 = vunpack.c.h.b16 %v276
    %v314 = vunpack.c.l.b16 %v277
    %v315 = vunpack.c.h.b16 %v277
    %v316 = vunpack.c.l.b16 %v278
    %v317 = vunpack.c.h.b16 %v278
    %v318 = vunpack.c.l.b16 %v279
    %v319 = vunpack.c.h.b16 %v279
    %v320 = vunpack.c.l.b16 %v280
    %v321 = vunpack.c.h.b16 %v280
    %v322 = vunpack.c.l.b16 %v281
    %v323 = vunpack.c.h.b16 %v281
    %v324 = vunpack.c.l.b16 %v282
    %v325 = vunpack.c.h.b16 %v282
    %v326 = vunpack.c.l.b16 %v283
    %v327 = vunpack.c.h.b16 %v283
    %v328 = vunpack.c.l.b16 %v284
    %v329 = vunpack.c.h.b16 %v284
    %v330 = vunpack.c.l.b16 %v285
    %v331 = vunpack.c.h.b16 %v285
    %v332 = vunpack.c.l.b16 %v286
    %v333 = vunpack.c.h.b16 %v286
    %v334 = vunpack.c.l.b16 %v287
    %v335 = vunpack.c.h.b16 %v287
    %v336 = vpack.c.b16 %v306, %v304
    %v337 = vpack.c.b16 %v307, %v305
    %v338 = vpack.c.b16 %v310, %v308
    %v339 = vpack.c.b16 %v311, %v309
    %v340 = vpack.c.b16 %v314, %v312
    %v341 = vpack.c.b16 %v315, %v313
    %v342 = vpack.c.b16 %v318, %v316
    %v343 = vpack.c.b16 %v319, %v317
    %v344 = vpack.c.b16 %v322, %v320
    %v345 = vpack.c.b16 %v323, %v321
    %v346 = vpack.c.b16 %v326, %v324
    %v347 = vpack.c.b16 %v327, %v325
    %v348 = vpack.c.b16 %v330, %v328
    %v349 = vpack.c.b16 %v331, %v329
    %v350 = vpack.c.b16 %v334, %v332
    %v351 = vpack.c.b16 %v335, %v333
    %368 = vmatprep.subr.bf16.mxu0 %v337
    %369 = vmatpush1.bf16.msra.mxu0 %v336
    %370 = vmatprep.subr.bf16.mxu0 %v339
    %371 = vmatpush1.bf16.msra.mxu0 %v338
    %372 = vmatprep.subr.bf16.mxu0 %v341
    %373 = vmatpush1.bf16.msra.mxu0 %v340
    %374 = vmatprep.subr.bf16.mxu0 %v343
    %375 = vmatpush1.bf16.msra.mxu0 %v342
    %376 = vmatprep.subr.bf16.mxu0 %v345
    %377 = vmatpush1.bf16.msra.mxu0 %v344
    %378 = vmatprep.subr.bf16.mxu0 %v347
    %379 = vmatpush1.bf16.msra.mxu0 %v346
    %380 = vmatprep.subr.bf16.mxu0 %v349
    %381 = vmatpush1.bf16.msra.mxu0 %v348
    %382 = vmatprep.subr.bf16.mxu0 %v351
    %383 = vmatpush1.bf16.msra.mxu0 %v350
    %384 = vmatprep.subr.bf16.mxu0 0
    %385 = vmatpush1.bf16.msra.mxu0 0
    %386 = vmatprep.subr.bf16.mxu0 0
    %387 = vmatpush1.bf16.msra.mxu0 0
    %388 = vmatprep.subr.bf16.mxu0 0
    %389 = vmatpush1.bf16.msra.mxu0 0
    %390 = vmatprep.subr.bf16.mxu0 0
    %391 = vmatpush1.bf16.msra.mxu0 0
    %392 = vmatprep.subr.bf16.mxu0 0
    %393 = vmatpush1.bf16.msra.mxu0 0
    %394 = vmatprep.subr.bf16.mxu0 0
    %395 = vmatpush1.bf16.msra.mxu0 0
    %396 = vmatprep.subr.bf16.mxu0 0
    %397 = vmatpush1.bf16.msra.mxu0 0
    %398 = vmatprep.subr.bf16.mxu0 0
    %399 = vmatpush1.bf16.msra.mxu0 0
    %400 = vmatprep.mubr.bf16.mxu0 0
    %401 = vmatmul.mubr.bf16.gmra.mrb[0].mxu0 %v271
    %v402 = vpop.f32.mrb[0].mxu0
    %v403 = vadd.f32 0.0, %v402
    %v404 = vpop.f32.mrb[0].mxu0
    %v405 = vadd.f32 0.0, %v404
    %v406 = vpop.f32.mrb[0].mxu0
    %v407 = vpop.f32.mrb[0].mxu0
    %408 = vdwg.mxu0
    %v409 = vlaneseq
    %v410 = vshrl.u32 %v409, 7
    %v411 = vsub.s32 3, %v410
    %v412 = vrot.slane %v76, %v411
    %v413 = vadd.f32 %v403, %v412
    %v414 = vadd.f32 %v158, %v405
    %vm415 = vcmp.gt.f32.partialorder %v414, 0.0
    %v416 = vmul.f32 %v414, 0.01
    %v417 = vsel %vm415, %v414, %v416
    %v418 = vpack.c.bf16 %v417, %v417
    %s419 = scalar_lea.vmem [#allocation8], 64
    %v420 = vld [vmem:[%s419] sm:$0xf]
    %v421 = vld [vmem:[%s419 + $0x4] sm:$0xf]
    %v422 = vld [vmem:[%s419 + $0x8] sm:$0xf]
    %v423 = vld [vmem:[%s419 + $0xc] sm:$0xf]
    %v424 = vld [vmem:[%s419 + $0x10] sm:$0xf]
    %v425 = vld [vmem:[%s419 + $0x14] sm:$0xf]
    %v426 = vld [vmem:[%s419 + $0x18] sm:$0xf]
    %v427 = vld [vmem:[%s419 + $0x1c] sm:$0xf]
    %v428 = vld [vmem:[%s419 + $0x20] sm:$0xf]
    %v429 = vld [vmem:[%s419 + $0x24] sm:$0xf]
    %v430 = vld [vmem:[%s419 + $0x28] sm:$0xf]
    %v431 = vld [vmem:[%s419 + $0x2c] sm:$0xf]
    %v432 = vld [vmem:[%s419 + $0x30] sm:$0xf]
    %v433 = vld [vmem:[%s419 + $0x34] sm:$0xf]
    %v434 = vld [vmem:[%s419 + $0x38] sm:$0xf]
    %v435 = vld [vmem:[%s419 + $0x3c] sm:$0xf]
    %v436 = vlaneseq
    %v437 = vshrl.u32 %v436, 7
    %v438 = vsub.s32 4, %v437
    %v439 = vrot.slane %v76, %v438
    %v456 = vunpack.c.l.b16 %v420
    %v457 = vunpack.c.l.b16 %v421
    %v458 = vunpack.c.l.b16 %v422
    %v459 = vunpack.c.l.b16 %v423
    %v460 = vunpack.c.l.b16 %v424
    %v461 = vunpack.c.l.b16 %v425
    %v462 = vunpack.c.l.b16 %v426
    %v463 = vunpack.c.l.b16 %v427
    %v464 = vunpack.c.l.b16 %v428
    %v465 = vunpack.c.l.b16 %v429
    %v466 = vunpack.c.l.b16 %v430
    %v467 = vunpack.c.l.b16 %v431
    %v468 = vunpack.c.l.b16 %v432
    %v469 = vunpack.c.l.b16 %v433
    %v470 = vunpack.c.l.b16 %v434
    %v471 = vunpack.c.l.b16 %v435
    %v472 = vpack.c.b16 %v457, %v456
    %v473 = vpack.c.b16 %v459, %v458
    %v474 = vpack.c.b16 %v461, %v460
    %v475 = vpack.c.b16 %v463, %v462
    %v476 = vpack.c.b16 %v465, %v464
    %v477 = vpack.c.b16 %v467, %v466
    %v478 = vpack.c.b16 %v469, %v468
    %v479 = vpack.c.b16 %v471, %v470
    %488 = vmatprep.subr.bf16.mxu0 0
    %489 = vmatpush1.bf16.msra.mxu0 %v472
    %490 = vmatprep.subr.bf16.mxu0 0
    %491 = vmatpush1.bf16.msra.mxu0 %v473
    %492 = vmatprep.subr.bf16.mxu0 0
    %493 = vmatpush1.bf16.msra.mxu0 %v474
    %494 = vmatprep.subr.bf16.mxu0 0
    %495 = vmatpush1.bf16.msra.mxu0 %v475
    %496 = vmatprep.subr.bf16.mxu0 0
    %497 = vmatpush1.bf16.msra.mxu0 %v476
    %498 = vmatprep.subr.bf16.mxu0 0
    %499 = vmatpush1.bf16.msra.mxu0 %v477
    %500 = vmatprep.subr.bf16.mxu0 0
    %501 = vmatpush1.bf16.msra.mxu0 %v478
    %502 = vmatprep.subr.bf16.mxu0 0
    %503 = vmatpush1.bf16.msra.mxu0 %v479
    %504 = vmatprep.subr.bf16.mxu0 0
    %505 = vmatpush1.bf16.msra.mxu0 0
    %506 = vmatprep.subr.bf16.mxu0 0
    %507 = vmatpush1.bf16.msra.mxu0 0
    %508 = vmatprep.subr.bf16.mxu0 0
    %509 = vmatpush1.bf16.msra.mxu0 0
    %510 = vmatprep.subr.bf16.mxu0 0
    %511 = vmatpush1.bf16.msra.mxu0 0
    %512 = vmatprep.subr.bf16.mxu0 0
    %513 = vmatpush1.bf16.msra.mxu0 0
    %514 = vmatprep.subr.bf16.mxu0 0
    %515 = vmatpush1.bf16.msra.mxu0 0
    %516 = vmatprep.subr.bf16.mxu0 0
    %517 = vmatpush1.bf16.msra.mxu0 0
    %518 = vmatprep.subr.bf16.mxu0 0
    %519 = vmatpush1.bf16.msra.mxu0 0
    %520 = vmatprep.mubr.bf16.mxu0 0
    %521 = vmatmul.mubr.bf16.gmra.mrb[0].mxu0 %v418
    %v522 = vpop.f32.mrb[0].mxu0
    %v523 = vadd.f32 %v439, %v522
    %v524 = vpop.f32.mrb[0].mxu0
    %v525 = vpop.f32.mrb[0].mxu0
    %v526 = vpop.f32.mrb[0].mxu0
    %527 = vdwg.mxu0
    %vm528 = vcmp.gt.f32.partialorder %v523, 0.0
    %v529 = vmul.f32 %v523, 0.01
    %v530 = vsel %vm528, %v523, %v529
    %v531 = vpack.c.bf16 %v530, %v530
    %s532 = scalar_lea.vmem [#allocation8], 128
    %v533 = vld [vmem:[%s532] sm:$0xf]
    %v534 = vld [vmem:[%s532 + $0x4] sm:$0xf]
    %v535 = vld [vmem:[%s532 + $0x8] sm:$0xf]
    %v536 = vld [vmem:[%s532 + $0xc] sm:$0xf]
    %v537 = vld [vmem:[%s532 + $0x10] sm:$0xf]
    %v538 = vld [vmem:[%s532 + $0x14] sm:$0xf]
    %v539 = vld [vmem:[%s532 + $0x18] sm:$0xf]
    %v540 = vld [vmem:[%s532 + $0x1c] sm:$0xf]
    %v541 = vld [vmem:[%s532 + $0x20] sm:$0xf]
    %v542 = vld [vmem:[%s532 + $0x24] sm:$0xf]
    %v543 = vld [vmem:[%s532 + $0x28] sm:$0xf]
    %v544 = vld [vmem:[%s532 + $0x2c] sm:$0xf]
    %v545 = vld [vmem:[%s532 + $0x30] sm:$0xf]
    %v546 = vld [vmem:[%s532 + $0x34] sm:$0xf]
    %v547 = vld [vmem:[%s532 + $0x38] sm:$0xf]
    %v548 = vld [vmem:[%s532 + $0x3c] sm:$0xf]
    %v549 = vlaneseq
    %v550 = vshrl.u32 %v549, 7
    %v551 = vsub.s32 5, %v550
    %v552 = vrot.slane %v76, %v551
    %v569 = vunpack.c.l.b16 %v533
    %v570 = vunpack.c.l.b16 %v534
    %v571 = vunpack.c.l.b16 %v535
    %v572 = vunpack.c.l.b16 %v536
    %v573 = vunpack.c.l.b16 %v537
    %v574 = vunpack.c.l.b16 %v538
    %v575 = vunpack.c.l.b16 %v539
    %v576 = vunpack.c.l.b16 %v540
    %v577 = vunpack.c.l.b16 %v541
    %v578 = vunpack.c.l.b16 %v542
    %v579 = vunpack.c.l.b16 %v543
    %v580 = vunpack.c.l.b16 %v544
    %v581 = vunpack.c.l.b16 %v545
    %v582 = vunpack.c.l.b16 %v546
    %v583 = vunpack.c.l.b16 %v547
    %v584 = vunpack.c.l.b16 %v548
    %v585 = vpack.c.b16 %v570, %v569
    %v586 = vpack.c.b16 %v572, %v571
    %v587 = vpack.c.b16 %v574, %v573
    %v588 = vpack.c.b16 %v576, %v575
    %v589 = vpack.c.b16 %v578, %v577
    %v590 = vpack.c.b16 %v580, %v579
    %v591 = vpack.c.b16 %v582, %v581
    %v592 = vpack.c.b16 %v584, %v583
    %601 = vmatprep.subr.bf16.mxu0 0
    %602 = vmatpush1.bf16.msra.mxu0 %v585
    %603 = vmatprep.subr.bf16.mxu0 0
    %604 = vmatpush1.bf16.msra.mxu0 %v586
    %605 = vmatprep.subr.bf16.mxu0 0
    %606 = vmatpush1.bf16.msra.mxu0 %v587
    %607 = vmatprep.subr.bf16.mxu0 0
    %608 = vmatpush1.bf16.msra.mxu0 %v588
    %609 = vmatprep.subr.bf16.mxu0 0
    %610 = vmatpush1.bf16.msra.mxu0 %v589
    %611 = vmatprep.subr.bf16.mxu0 0
    %612 = vmatpush1.bf16.msra.mxu0 %v590
    %613 = vmatprep.subr.bf16.mxu0 0
    %614 = vmatpush1.bf16.msra.mxu0 %v591
    %615 = vmatprep.subr.bf16.mxu0 0
    %616 = vmatpush1.bf16.msra.mxu0 %v592
    %617 = vmatprep.subr.bf16.mxu0 0
    %618 = vmatpush1.bf16.msra.mxu0 0
    %619 = vmatprep.subr.bf16.mxu0 0
    %620 = vmatpush1.bf16.msra.mxu0 0
    %621 = vmatprep.subr.bf16.mxu0 0
    %622 = vmatpush1.bf16.msra.mxu0 0
    %623 = vmatprep.subr.bf16.mxu0 0
    %624 = vmatpush1.bf16.msra.mxu0 0
    %625 = vmatprep.subr.bf16.mxu0 0
    %626 = vmatpush1.bf16.msra.mxu0 0
    %627 = vmatprep.subr.bf16.mxu0 0
    %628 = vmatpush1.bf16.msra.mxu0 0
    %629 = vmatprep.subr.bf16.mxu0 0
    %630 = vmatpush1.bf16.msra.mxu0 0
    %631 = vmatprep.subr.bf16.mxu0 0
    %632 = vmatpush1.bf16.msra.mxu0 0
    %633 = vmatprep.mubr.bf16.mxu0 0
    %634 = vmatmul.mubr.bf16.gmra.mrb[0].mxu0 %v531
    %v635 = vpop.f32.mrb[0].mxu0
    %v636 = vadd.f32 %v552, %v635
    %v637 = vpop.f32.mrb[0].mxu0
    %v638 = vpop.f32.mrb[0].mxu0
    %v639 = vpop.f32.mrb[0].mxu0
    %640 = vdwg.mxu0
    %v641 = vlaneseq
    %v642 = vand.u32 %v641, 127
    %vm643 = vcmp.ge.s32.totalorder %v642, 4
    %vm644 = vcmp.lt.s32.totalorder %v642, 8
    %vm645 = vmand %vm643, %vm644
    %v646 = vsel %vm645, %v413, 0.0
    %v647 = vmul.f32 %v646, 1.442695
    %v648 = vpow.pop %v647
    %v649 = vsel %vm645, %v648, %v413
    %v650 = vadd.f32 %v649, %v636
    %v651 = vpack.c.bf16 %v650, %v650
    %652 = vst [vmem:[#allocation10] sm:$0xf] %v651
    // Predicated region
    $region38: #{tpu_custom_call.1} parent=1 // pred_check
      _
    $region39: #{tpu_custom_call.1} parent=1 // pred_check_branch
      %654 = sbr.rel (0) target = $region41
    $region40: #{tpu_custom_call.1} parent=1 // pred_region
      %s656 = ssub.s32 64, 64
      %657 = vsyncadd [#allocation4], %s656
      %s659 = sshll.u32 [#allocation10], 4
      %s660 = int_to_ptr.vmem [resolvable:$true] %s659
      %662 = dma.vmem_to_hbm [thread:$0]  %s660, 64, %s5, [#allocation4]
    $region41: #{tpu_custom_call.1} parent=1 // pred_fallthru
      _
    // Predicated region
    $region42: #{tpu_custom_call.1} parent=1 // pred_check
      _
    $region43: #{tpu_custom_call.1} parent=1 // pred_check_branch
      %664 = sbr.rel (0) target = $region45
    $region44: #{tpu_custom_call.1} parent=1 // pred_region
      %665 = dma.done [#allocation4], 64
    $region45: #{tpu_custom_call.1} parent=1 // pred_fallthru
      _
    %666 = vsyncpa [#allocation3], 1
    %667 = vsyncpa [#allocation6], 1
    %668 = vsyncpa [#allocation9], 1
    %669 = vsyncpa [#allocation4], 1

</llo_original>
